<compile_context>
chip_gen: v7x
topology: tpu7x:2x2x1
jax: 0.10.0
libtpu: 0.0.40
codegen_flags: <defaults>
</compile_context>

<pallas_src>
import functools

import jax
import jax.numpy as jnp
from jax.experimental import pallas as pl
from jax.experimental.pallas import tpu as pltpu

LANE = 128
BF16_SUBLANE = 16  # bf16 packs 16 rows per vreg sublane group


def _round_up(x, m):
    return ((x + m - 1) // m) * m


def _vmem_capacity_bytes():
    """Generation-aware VMEM capacity (falls back to v7x's 64 MiB if unknown)."""
    try:
        info = pltpu.get_tpu_info()
        cap = getattr(info, "vmem_capacity_bytes", None)
        if cap:
            return int(cap)
    except Exception:
        pass
    return 64 * 1024 * 1024


def _param_spec(shape):
    """Grid-invariant (VMEM-resident) block: single-buffer — double-buffering a constant
    block only doubles its VMEM footprint."""
    try:
        return pl.BlockSpec(shape, lambda i: (0,) * len(shape),
                            pipeline_mode=pl.Buffered(1))
    except TypeError:
        # Older/newer jax without pipeline_mode on BlockSpec: fall back to default buffering.
        return pl.BlockSpec(shape, lambda i: (0,) * len(shape))


def _make_mlp_kernel(num_hidden_layers):
    """Fused MLP forward kernel.

    Ref order: x_ref, W0, b0, ..., W{H-1}, b{H-1}, W_out, b_out, o_ref.
    x tile is bf16 (tile_b, in); weights bf16; biases f32 (1, out_p); out tile f32.
    The padded lanes of b_out hold -1e30 so log_softmax ignores padded output columns.
    """

    def kernel(x_ref, *refs):
        o_ref = refs[-1]
        params = refs[:-1]

        h = x_ref[...]  # bf16 (tile_b, in)

        # Hidden layers: Linear (bf16 MXU, f32 acc) -> bias -> ReLU -> Dropout(identity).
        for i in range(num_hidden_layers):
            w = params[2 * i][...]          # bf16 (in_p, out_p)
            b = params[2 * i + 1][...]      # f32  (1, out_p)
            a = jnp.dot(h, w, preferred_element_type=jnp.float32) + b
            h = jnp.maximum(a, 0.0).astype(jnp.bfloat16)

        # Output layer (no activation). Padded bias lanes are -1e30 (mask baked in).
        w_out = params[2 * num_hidden_layers][...]
        b_out = params[2 * num_hidden_layers + 1][...]
        logits = jnp.dot(h, w_out, preferred_element_type=jnp.float32) + b_out

        # log_softmax along the feature axis (PyTorch dim=1), in f32.
        m = jnp.max(logits, axis=-1, keepdims=True)
        shifted = logits - m
        lse = jnp.log(jnp.sum(jnp.exp(shifted), axis=-1, keepdims=True))
        o_ref[...] = (shifted - lse).astype(o_ref.dtype)

    return kernel


def init_classifier_params(key, input_size, output_size, hidden_layers):
    """Deterministic init mimicking nn.Linear's U(-1/sqrt(in), 1/sqrt(in)).

    Returns [W0, b0, ..., W_out, b_out]; W is (in, out), b is (1, out), all f32.
    """
    sizes = [input_size] + list(hidden_layers) + [output_size]
    params = []
    for i, (fan_in, fan_out) in enumerate(zip(sizes[:-1], sizes[1:])):
        kw, kb = jax.random.split(jax.random.fold_in(key, i))
        bound = 1.0 / jnp.sqrt(jnp.float32(fan_in))
        w = jax.random.uniform(kw, (fan_in, fan_out), jnp.float32, -bound, bound)
        b = jax.random.uniform(kb, (1, fan_out), jnp.float32, -bound, bound)
        params.extend([w, b])
    return params


def prepare_classifier_params(params):
    """One-time pad + cast (hoisted out of the forward).

    Weights -> bf16 with lane-dense (multiple-of-128) output dims; biases stay f32.
    The first weight's input dim is left unpadded (matches x's unpadded feature dim).
    The output bias's padded lanes are set to -1e30, baking the log_softmax lane mask.
    """
    n_layers = len(params) // 2
    prepared = []
    for li in range(n_layers):
        w = jnp.asarray(params[2 * li], jnp.float32)
        b = jnp.asarray(params[2 * li + 1], jnp.float32).reshape(1, -1)
        fan_in, fan_out = w.shape
        fi_p = fan_in if li == 0 else _round_up(fan_in, LANE)
        fo_p = _round_up(fan_out, LANE)
        w_p = jnp.zeros((fi_p, fo_p), jnp.bfloat16)
        w_p = w_p.at[:fan_in, :fan_out].set(w.astype(jnp.bfloat16))
        if li == n_layers - 1:
            # Large finite negative (not -inf) -> exp() underflows to 0, no inf-inf paths.
            b_p = jnp.full((1, fo_p), -1e30, jnp.float32)
        else:
            b_p = jnp.zeros((1, fo_p), jnp.float32)
        b_p = b_p.at[:, :fan_out].set(b)
        prepared.extend([w_p, b_p])
    return prepared


@functools.partial(jax.jit, static_argnames=("num_hidden_layers", "output_size"))
def classifier_forward(x, padded_params, num_hidden_layers, output_size):
    """Fused MLP forward pass as one batch-gridded Pallas call (eval-mode dropout)."""
    batch, input_size = x.shape
    padded_out = padded_params[-1].shape[-1]

    # Batch tile: big (HBM efficiency rises sharply with tile size), multiple of 16 for
    # bf16 sublane packing; force >=2 grid steps when batch permits so the parallel axis
    # spans v7x's two TensorCores.
    tile_b = min(512, _round_up(max(batch, 1), BF16_SUBLANE))
    if batch >= 2 * BF16_SUBLANE:
        tile_b = min(tile_b, _round_up(pl.cdiv(batch, 2), BF16_SUBLANE))
    batch_p = _round_up(batch, tile_b)
    grid = (batch_p // tile_b,)

    # bf16 input stream; pad only the batch dim (feature dim stays unpadded / full-extent).
    x_bf = x.astype(jnp.bfloat16)
    if batch_p != batch:
        x_bf = jnp.pad(x_bf, ((0, batch_p - batch), (0, 0)))

    kernel = _make_mlp_kernel(num_hidden_layers)

    in_specs = [pl.BlockSpec((tile_b, input_size), lambda i: (i, 0))]
    for li in range(num_hidden_layers + 1):
        in_specs.append(_param_spec(padded_params[2 * li].shape))      # weight (resident)
        in_specs.append(_param_spec(padded_params[2 * li + 1].shape))  # bias   (resident)
    out_specs = pl.BlockSpec((tile_b, padded_out), lambda i: (i, 0))

    # Advisory cost estimate for XLA scheduling.
    param_bytes = sum(int(p.size) * p.dtype.itemsize for p in padded_params)
    flops = 2 * batch_p * sum(int(padded_params[2 * li].shape[0]) *
                              int(padded_params[2 * li].shape[1])
                              for li in range(num_hidden_layers + 1))
    bytes_accessed = x_bf.size * 2 + param_bytes + batch_p * padded_out * 4
    cost = pl.CostEstimate(flops=int(flops),
                           transcendentals=int(batch_p * padded_out),
                           bytes_accessed=int(bytes_accessed))

    # VMEM budget: single-buffered resident params + double-buffered x/out tiles
    # + activation headroom; generation-aware clamp (v7x has 64 MiB/TC vs 128 MiB).
    max_feat = max([input_size] + [int(padded_params[2 * li].shape[1])
                                   for li in range(num_hidden_layers + 1)])
    x_tile_bytes = tile_b * input_size * 2
    out_tile_bytes = tile_b * padded_out * 4
    act_bytes = tile_b * max_feat * 4 * 3
    need = param_bytes + 2 * (x_tile_bytes + out_tile_bytes) + act_bytes
    vmem_cap = _vmem_capacity_bytes()
    vmem_limit = int(min(max(int(1.25 * need), 8 * 1024 * 1024), int(0.7 * vmem_cap)))

    out_p = pl.pallas_call(
        kernel,
        out_shape=jax.ShapeDtypeStruct((batch_p, padded_out), jnp.float32),
        grid=grid,
        in_specs=in_specs,
        out_specs=out_specs,
        compiler_params=pltpu.CompilerParams(
            dimension_semantics=("parallel",),
            vmem_limit_bytes=vmem_limit),
        cost_estimate=cost,
    )(x_bf, *padded_params)

    return out_p[:batch, :output_size]


def reference_forward(x, params, num_hidden_layers):
    """Pure-JAX reference (same bf16-matmul / f32-accumulate recipe as the kernel)."""
    h = x.astype(jnp.float32)
    for i in range(num_hidden_layers):
        w = params[2 * i].astype(jnp.bfloat16)
        h = jnp.dot(h.astype(jnp.bfloat16), w,
                    preferred_element_type=jnp.float32) + params[2 * i + 1].reshape(1, -1)
        h = jnp.maximum(h, 0.0)
    w_out = params[2 * num_hidden_layers].astype(jnp.bfloat16)
    logits = jnp.dot(h.astype(jnp.bfloat16), w_out,
                     preferred_element_type=jnp.float32) + params[-1].reshape(1, -1)
    return jax.nn.log_softmax(logits, axis=1)


if __name__ == "__main__":
    # Small shapes consistent with the module's forward: x is (batch, input_size).
    batch = 8
    input_size = 32
    hidden_layers = [64, 32]
    output_size = 16

    key = jax.random.PRNGKey(0)
    k_x, k_p = jax.random.split(key)

    x = jax.random.normal(k_x, (batch, input_size), jnp.float32)
    params = init_classifier_params(k_p, input_size, output_size, hidden_layers)

    # One-time parameter preparation (padding / bf16 cast hoisted out of the forward).
    padded_params = prepare_classifier_params(params)

    out = classifier_forward(x, padded_params,
                             num_hidden_layers=len(hidden_layers),
                             output_size=output_size)
    out = jax.block_until_ready(out)

    ref = reference_forward(x, params, len(hidden_layers))
    assert out.shape == (batch, output_size)
    assert jnp.allclose(out, ref, atol=2e-3, rtol=2e-3), "mismatch vs reference"

    print("KERNEL_OK")
</pallas_src>

<mosaic_0001>
module attributes {stable_mosaic.version = 11 : i64} {
  func.func @kernel(%arg0: i32, %arg1: memref<16x32xbf16, #tpu.memory_space<vmem>>, %arg2: memref<32x128xbf16, #tpu.memory_space<vmem>>, %arg3: memref<1x128xf32, #tpu.memory_space<vmem>>, %arg4: memref<128x128xbf16, #tpu.memory_space<vmem>>, %arg5: memref<1x128xf32, #tpu.memory_space<vmem>>, %arg6: memref<128x128xbf16, #tpu.memory_space<vmem>>, %arg7: memref<1x128xf32, #tpu.memory_space<vmem>>, %arg8: memref<16x128xf32, #tpu.memory_space<vmem>>) attributes {dimension_semantics = [#tpu.dimension_semantics<parallel>], iteration_bounds = array<i64: 1>, scalar_prefetch = 0 : i64, scratch_operands = 0 : i64, tpu.core_type = #tpu.core_type<tc>, window_params = [{transform_indices = @transform_0, window_bounds = array<i64: 16, 32>}, {pipeline_mode = #tpu.pipeline_mode<synchronous>, transform_indices = @transform_1, window_bounds = array<i64: 32, 128>}, {pipeline_mode = #tpu.pipeline_mode<synchronous>, transform_indices = @transform_2, window_bounds = array<i64: 1, 128>}, {pipeline_mode = #tpu.pipeline_mode<synchronous>, transform_indices = @transform_3, window_bounds = array<i64: 128, 128>}, {pipeline_mode = #tpu.pipeline_mode<synchronous>, transform_indices = @transform_4, window_bounds = array<i64: 1, 128>}, {pipeline_mode = #tpu.pipeline_mode<synchronous>, transform_indices = @transform_5, window_bounds = array<i64: 128, 128>}, {pipeline_mode = #tpu.pipeline_mode<synchronous>, transform_indices = @transform_6, window_bounds = array<i64: 1, 128>}, {transform_indices = @transform_7, window_bounds = array<i64: 16, 128>}]} {
    %c0 = arith.constant 0 : index
    %c0_0 = arith.constant 0 : index
    %0 = vector.load %arg1[%c0, %c0_0] : memref<16x32xbf16, #tpu.memory_space<vmem>>, vector<16x32xbf16>
    %c0_1 = arith.constant 0 : index
    %c0_2 = arith.constant 0 : index
    %1 = vector.load %arg2[%c0_1, %c0_2] : memref<32x128xbf16, #tpu.memory_space<vmem>>, vector<32x128xbf16>
    %c0_3 = arith.constant 0 : index
    %c0_4 = arith.constant 0 : index
    %2 = vector.load %arg3[%c0_3, %c0_4] : memref<1x128xf32, #tpu.memory_space<vmem>>, vector<1x128xf32>
    %cst = arith.constant dense<0.000000e+00> : vector<16x128xf32>
    %3 = tpu.matmul %0, %1, %cst {dimension_numbers = #tpu.dot_dimension_numbers<[1], [0], [0], [1], [0, 0, 1, 1], [], []>} : vector<16x32xbf16>, vector<32x128xbf16>, vector<16x128xf32> -> vector<16x128xf32>
    %4 = vector.broadcast %2 : vector<1x128xf32> to vector<16x128xf32>
    %5 = arith.addf %3, %4 : vector<16x128xf32>
    %cst_5 = arith.constant 0.000000e+00 : f32
    %6 = vector.broadcast %cst_5 : f32 to vector<16x128xf32>
    %7 = arith.maximumf %5, %6 : vector<16x128xf32>
    %8 = arith.truncf %7 : vector<16x128xf32> to vector<16x128xbf16>
    %c0_6 = arith.constant 0 : index
    %c0_7 = arith.constant 0 : index
    %9 = vector.load %arg4[%c0_6, %c0_7] : memref<128x128xbf16, #tpu.memory_space<vmem>>, vector<128x128xbf16>
    %c0_8 = arith.constant 0 : index
    %c0_9 = arith.constant 0 : index
    %10 = vector.load %arg5[%c0_8, %c0_9] : memref<1x128xf32, #tpu.memory_space<vmem>>, vector<1x128xf32>
    %cst_10 = arith.constant dense<0.000000e+00> : vector<16x128xf32>
    %11 = tpu.matmul %8, %9, %cst_10 {dimension_numbers = #tpu.dot_dimension_numbers<[1], [0], [0], [1], [0, 0, 1, 1], [], []>} : vector<16x128xbf16>, vector<128x128xbf16>, vector<16x128xf32> -> vector<16x128xf32>
    %12 = vector.broadcast %10 : vector<1x128xf32> to vector<16x128xf32>
    %13 = arith.addf %11, %12 : vector<16x128xf32>
    %cst_11 = arith.constant 0.000000e+00 : f32
    %14 = vector.broadcast %cst_11 : f32 to vector<16x128xf32>
    %15 = arith.maximumf %13, %14 : vector<16x128xf32>
    %16 = arith.truncf %15 : vector<16x128xf32> to vector<16x128xbf16>
    %c0_12 = arith.constant 0 : index
    %c0_13 = arith.constant 0 : index
    %17 = vector.load %arg6[%c0_12, %c0_13] : memref<128x128xbf16, #tpu.memory_space<vmem>>, vector<128x128xbf16>
    %c0_14 = arith.constant 0 : index
    %c0_15 = arith.constant 0 : index
    %18 = vector.load %arg7[%c0_14, %c0_15] : memref<1x128xf32, #tpu.memory_space<vmem>>, vector<1x128xf32>
    %cst_16 = arith.constant dense<0.000000e+00> : vector<16x128xf32>
    %19 = tpu.matmul %16, %17, %cst_16 {dimension_numbers = #tpu.dot_dimension_numbers<[1], [0], [0], [1], [0, 0, 1, 1], [], []>} : vector<16x128xbf16>, vector<128x128xbf16>, vector<16x128xf32> -> vector<16x128xf32>
    %20 = vector.broadcast %18 : vector<1x128xf32> to vector<16x128xf32>
    %21 = arith.addf %19, %20 : vector<16x128xf32>
    %cst_17 = arith.constant dense<0xFF800000> : vector<16xf32>
    %22 = vector.multi_reduction <maximumf>, %21, %cst_17 [1] : vector<16x128xf32> to vector<16xf32>
    %23 = vector.shape_cast %22 : vector<16xf32> to vector<16x1xf32>
    %24 = vector.broadcast %23 : vector<16x1xf32> to vector<16x128xf32>
    %25 = arith.subf %21, %24 : vector<16x128xf32>
    %26 = math.exp %25 : vector<16x128xf32>
    %cst_18 = arith.constant dense<0.000000e+00> : vector<16xf32>
    %27 = vector.multi_reduction <add>, %26, %cst_18 [1] : vector<16x128xf32> to vector<16xf32>
    %28 = vector.shape_cast %27 : vector<16xf32> to vector<16x1xf32>
    %29 = math.log %28 : vector<16x1xf32>
    %30 = vector.broadcast %29 : vector<16x1xf32> to vector<16x128xf32>
    %31 = arith.subf %25, %30 : vector<16x128xf32>
    %c0_19 = arith.constant 0 : index
    %c0_20 = arith.constant 0 : index
    %32 = vector.load %arg8[%c0_19, %c0_20] : memref<16x128xf32, #tpu.memory_space<vmem>>, vector<16x128xf32>
    tpu.vector_store %arg8[%c0_19, %c0_20], %31 {strides = array<i32>} : memref<16x128xf32, #tpu.memory_space<vmem>>, vector<16x128xf32>,
    return
  }
  func.func @transform_0(%arg0: i32) -> (i32, i32) {
    %c0_i32 = arith.constant 0 : i32
    %c0_i32_0 = arith.constant 0 : i32
    return %arg0, %c0_i32 : i32, i32
  }
  func.func @transform_1(%arg0: i32) -> (i32, i32) {
    %c0_i32 = arith.constant 0 : i32
    %c0_i32_0 = arith.constant 0 : i32
    %c0_i32_1 = arith.constant 0 : i32
    return %c0_i32, %c0_i32_0 : i32, i32
  }
  func.func @transform_2(%arg0: i32) -> (i32, i32) {
    %c0_i32 = arith.constant 0 : i32
    %c0_i32_0 = arith.constant 0 : i32
    %c0_i32_1 = arith.constant 0 : i32
    return %c0_i32, %c0_i32_0 : i32, i32
  }
  func.func @transform_3(%arg0: i32) -> (i32, i32) {
    %c0_i32 = arith.constant 0 : i32
    %c0_i32_0 = arith.constant 0 : i32
    %c0_i32_1 = arith.constant 0 : i32
    return %c0_i32, %c0_i32_0 : i32, i32
  }
  func.func @transform_4(%arg0: i32) -> (i32, i32) {
    %c0_i32 = arith.constant 0 : i32
    %c0_i32_0 = arith.constant 0 : i32
    %c0_i32_1 = arith.constant 0 : i32
    return %c0_i32, %c0_i32_0 : i32, i32
  }
  func.func @transform_5(%arg0: i32) -> (i32, i32) {
    %c0_i32 = arith.constant 0 : i32
    %c0_i32_0 = arith.constant 0 : i32
    %c0_i32_1 = arith.constant 0 : i32
    return %c0_i32, %c0_i32_0 : i32, i32
  }
  func.func @transform_6(%arg0: i32) -> (i32, i32) {
    %c0_i32 = arith.constant 0 : i32
    %c0_i32_0 = arith.constant 0 : i32
    %c0_i32_1 = arith.constant 0 : i32
    return %c0_i32, %c0_i32_0 : i32, i32
  }
  func.func @transform_7(%arg0: i32) -> (i32, i32) {
    %c0_i32 = arith.constant 0 : i32
    %c0_i32_0 = arith.constant 0 : i32
    return %arg0, %c0_i32 : i32, i32
  }
}

</mosaic_0001>

<llo_original>
// kernel: classifier_forward.1
$region0: #{classifier_forward.1}
  #allocation0 [shape = 'u32[]', space=smem, size = 0x4, offset = 0x4, fixed_abs, tag = 'smem constant byte address 0x4 - core index']
  #allocation1 [shape = 'u32[144,128]{1,0:T(1,128)}', space=vmem, size = 0x12000, scoped, tag = 'internal scratch']
  %s0 = inlined_call_operand.vmem [shape: bf16[16,32], index: 0, kind: input, shape index: {}]
  %s1 = inlined_call_operand.vmem [shape: bf16[32,128], index: 1, kind: input, shape index: {}]
  %s2 = inlined_call_operand.vmem [shape: f32[1,128], index: 2, kind: input, shape index: {}]
  %s3 = inlined_call_operand.hbm [shape: bf16[128,128], index: 3, kind: input, shape index: {}]
  %s4 = inlined_call_operand.vmem [shape: f32[1,128], index: 4, kind: input, shape index: {}]
  %s5 = inlined_call_operand.hbm [shape: bf16[128,128], index: 5, kind: input, shape index: {}]
  %s6 = inlined_call_operand.vmem [shape: f32[1,128], index: 6, kind: input, shape index: {}]
  %s7 = inlined_call_operand.vmem [shape: f32[16,128], index: 7, kind: output, shape index: {}]
  %s8 = sld [smem:[#allocation0]]
  $region46: #{classifier_forward.1} parent=0
    _
  %s10 = ssub.s32 1, %s8
  %s11 = scalar_select 0, %s10, %s8
  $region1: #{classifier_forward.1} parent=0
    #allocation2 [shape = 'u8[32768]{0}', space=vmem, size = 0x8000, scoped, tag = 'input window, operand 3, single buffered']
    #allocation3 [shape = 's32[1]{0}', space=sflag, size = 0x4, scoped, tag = 'scoped memory for classifier_forward.1']
    #allocation4 [shape = 'u8[32768]{0}', space=vmem, size = 0x8000, scoped, tag = 'input window, operand 5, single buffered']
    #allocation5 [shape = 's32[1]{0}', space=sflag, size = 0x4, scoped, tag = 'scoped memory for classifier_forward.1']
    %12 = vsyncpa [#allocation3], 0
    %13 = vsyncpa [#allocation5], 0
    // Predicated region
    $region2: #{classifier_forward.1} parent=1 // pred_check
      _
    $region3: #{classifier_forward.1} parent=1 // pred_check_branch
      %15 = sbr.rel (0) target = $region5
    $region4: #{classifier_forward.1} parent=1 // pred_region
      _
    $region5: #{classifier_forward.1} parent=1 // pred_fallthru
      _
    // Predicated region
    $region6: #{classifier_forward.1} parent=1 // pred_check
      _
    $region7: #{classifier_forward.1} parent=1 // pred_check_branch
      %17 = sbr.rel (0) target = $region9
    $region8: #{classifier_forward.1} parent=1 // pred_region
      _
    $region9: #{classifier_forward.1} parent=1 // pred_fallthru
      _
    // Predicated region
    $region10: #{classifier_forward.1} parent=1 // pred_check
      _
    $region11: #{classifier_forward.1} parent=1 // pred_check_branch
      %19 = sbr.rel (0) target = $region13
    $region12: #{classifier_forward.1} parent=1 // pred_region
      _
    $region13: #{classifier_forward.1} parent=1 // pred_fallthru
      _
    // Predicated region
    $region14: #{classifier_forward.1} parent=1 // pred_check
      _
    $region15: #{classifier_forward.1} parent=1 // pred_check_branch
      %21 = sbr.rel (0) target = $region17
    $region16: #{classifier_forward.1} parent=1 // pred_region
      %s23 = ssub.s32 1024, 1024
      %24 = vsyncadd [#allocation3], %s23
      %s25 = sshll.u32 [#allocation2], 4
      %s26 = int_to_ptr.vmem [resolvable:$true] %s25
      %31 = dma.hbm_to_vmem [thread:$0]  %s3, 1024, %s26, [#allocation3], 64, 64, 4
    $region17: #{classifier_forward.1} parent=1 // pred_fallthru
      _
    // Predicated region
    $region18: #{classifier_forward.1} parent=1 // pred_check
      _
    $region19: #{classifier_forward.1} parent=1 // pred_check_branch
      %33 = sbr.rel (0) target = $region21
    $region20: #{classifier_forward.1} parent=1 // pred_region
      _
    $region21: #{classifier_forward.1} parent=1 // pred_fallthru
      _
    // Predicated region
    $region22: #{classifier_forward.1} parent=1 // pred_check
      _
    $region23: #{classifier_forward.1} parent=1 // pred_check_branch
      %35 = sbr.rel (0) target = $region25
    $region24: #{classifier_forward.1} parent=1 // pred_region
      %s37 = ssub.s32 1024, 1024
      %38 = vsyncadd [#allocation5], %s37
      %s39 = sshll.u32 [#allocation4], 4
      %s40 = int_to_ptr.vmem [resolvable:$true] %s39
      %45 = dma.hbm_to_vmem [thread:$0]  %s5, 1024, %s40, [#allocation5], 64, 64, 4
    $region25: #{classifier_forward.1} parent=1 // pred_fallthru
      _
    // Predicated region
    $region26: #{classifier_forward.1} parent=1 // pred_check
      _
    $region27: #{classifier_forward.1} parent=1 // pred_check_branch
      %47 = sbr.rel (0) target = $region29
    $region28: #{classifier_forward.1} parent=1 // pred_region
      _
    $region29: #{classifier_forward.1} parent=1 // pred_fallthru
      _
    // Predicated region
    $region30: #{classifier_forward.1} parent=1 // pred_check
      _
    $region31: #{classifier_forward.1} parent=1 // pred_check_branch
      %49 = sbr.rel (0) target = $region33
    $region32: #{classifier_forward.1} parent=1 // pred_region
      %50 = dma.done [#allocation3], 1024
    $region33: #{classifier_forward.1} parent=1 // pred_fallthru
      _
    // Predicated region
    $region34: #{classifier_forward.1} parent=1 // pred_check
      _
    $region35: #{classifier_forward.1} parent=1 // pred_check_branch
      %52 = sbr.rel (0) target = $region37
    $region36: #{classifier_forward.1} parent=1 // pred_region
      %53 = dma.done [#allocation5], 1024
    $region37: #{classifier_forward.1} parent=1 // pred_fallthru
      _
    %v55 = vld [vmem:[%s0] sm:$0xf]
    %v56 = vld [vmem:[%s0 + $0x4] sm:$0xf]
    %v57 = vld [vmem:[%s1] sm:$0xf]
    %v58 = vld [vmem:[%s1 + $0x4] sm:$0xf]
    %v59 = vld [vmem:[%s1 + $0x8] sm:$0xf]
    %v60 = vld [vmem:[%s1 + $0xc] sm:$0xf]
    %v61 = vld [vmem:[%s2] sm:$0x1]
    %v63 = vlaneseq
    %v64 = vshrl.u32 %v63, 7
    %v65 = vsub.s32 0, %v64
    %v66 = vrot.slane %v61, %v65
    %v70 = vunpack.c.l.b16 %v55
    %v71 = vunpack.c.l.b16 %v56
    %v72 = vpack.c.b16 %v71, %v70
    %v77 = vunpack.c.l.b16 %v57
    %v78 = vunpack.c.l.b16 %v58
    %v79 = vunpack.c.l.b16 %v59
    %v80 = vunpack.c.l.b16 %v60
    %v81 = vpack.c.b16 %v78, %v77
    %v82 = vpack.c.b16 %v80, %v79
    %vm85 = vcmask 261120
    %v87 = vsel %vm85, %v72, 0
    %89 = vmatprep.subr.bf16.mxu0 0
    %90 = vmatpush1.bf16.msra.mxu0 %v81
    %91 = vmatprep.subr.bf16.mxu0 0
    %92 = vmatpush1.bf16.msra.mxu0 %v82
    %93 = vmatprep.subr.bf16.mxu0 0
    %94 = vmatpush1.bf16.msra.mxu0 0
    %95 = vmatprep.subr.bf16.mxu0 0
    %96 = vmatpush1.bf16.msra.mxu0 0
    %97 = vmatprep.subr.bf16.mxu0 0
    %98 = vmatpush1.bf16.msra.mxu0 0
    %99 = vmatprep.subr.bf16.mxu0 0
    %100 = vmatpush1.bf16.msra.mxu0 0
    %101 = vmatprep.subr.bf16.mxu0 0
    %102 = vmatpush1.bf16.msra.mxu0 0
    %103 = vmatprep.subr.bf16.mxu0 0
    %104 = vmatpush1.bf16.msra.mxu0 0
    %105 = vmatprep.subr.bf16.mxu0 0
    %106 = vmatpush1.bf16.msra.mxu0 0
    %107 = vmatprep.subr.bf16.mxu0 0
    %108 = vmatpush1.bf16.msra.mxu0 0
    %109 = vmatprep.subr.bf16.mxu0 0
    %110 = vmatpush1.bf16.msra.mxu0 0
    %111 = vmatprep.subr.bf16.mxu0 0
    %112 = vmatpush1.bf16.msra.mxu0 0
    %113 = vmatprep.subr.bf16.mxu0 0
    %114 = vmatpush1.bf16.msra.mxu0 0
    %115 = vmatprep.subr.bf16.mxu0 0
    %116 = vmatpush1.bf16.msra.mxu0 0
    %117 = vmatprep.subr.bf16.mxu0 0
    %118 = vmatpush1.bf16.msra.mxu0 0
    %119 = vmatprep.subr.bf16.mxu0 0
    %120 = vmatpush1.bf16.msra.mxu0 0
    %121 = vmatprep.mubr.bf16.mxu0 0
    %122 = vmatmul.mubr.bf16.gmra.mrb[0].mxu0 %v87
    %v123 = vpop.f32.mrb[0].mxu0
    %v124 = vadd.f32 %v66, %v123
    %v125 = vpop.f32.mrb[0].mxu0
    %v126 = vpop.f32.mrb[0].mxu0
    %v127 = vadd.f32 %v66, %v126
    %v128 = vpop.f32.mrb[0].mxu0
    %129 = vdwg.mxu0
    %v130 = vmax.f32 %v124, 0.0
    %v131 = vmax.f32 %v127, 0.0
    %v132 = vpack.c.bf16 %v131, %v130
    %v133 = vld [vmem:[#allocation2] sm:$0xf]
    %v134 = vld [vmem:[#allocation2 + $0x4] sm:$0xf]
    %v135 = vld [vmem:[#allocation2 + $0x8] sm:$0xf]
    %v136 = vld [vmem:[#allocation2 + $0xc] sm:$0xf]
    %v137 = vld [vmem:[#allocation2 + $0x10] sm:$0xf]
    %v138 = vld [vmem:[#allocation2 + $0x14] sm:$0xf]
    %v139 = vld [vmem:[#allocation2 + $0x18] sm:$0xf]
    %v140 = vld [vmem:[#allocation2 + $0x1c] sm:$0xf]
    %v141 = vld [vmem:[#allocation2 + $0x20] sm:$0xf]
    %v142 = vld [vmem:[#allocation2 + $0x24] sm:$0xf]
    %v143 = vld [vmem:[#allocation2 + $0x28] sm:$0xf]
    %v144 = vld [vmem:[#allocation2 + $0x2c] sm:$0xf]
    %v145 = vld [vmem:[#allocation2 + $0x30] sm:$0xf]
    %v146 = vld [vmem:[#allocation2 + $0x34] sm:$0xf]
    %v147 = vld [vmem:[#allocation2 + $0x38] sm:$0xf]
    %v148 = vld [vmem:[#allocation2 + $0x3c] sm:$0xf]
    %v149 = vld [vmem:[%s4] sm:$0x1]
    %v151 = vlaneseq
    %v152 = vshrl.u32 %v151, 7
    %v153 = vsub.s32 0, %v152
    %v154 = vrot.slane %v149, %v153
    %v172 = vunpack.c.l.b16 %v133
    %v173 = vunpack.c.l.b16 %v134
    %v174 = vunpack.c.l.b16 %v135
    %v175 = vunpack.c.l.b16 %v136
    %v176 = vunpack.c.l.b16 %v137
    %v177 = vunpack.c.l.b16 %v138
    %v178 = vunpack.c.l.b16 %v139
    %v179 = vunpack.c.l.b16 %v140
    %v180 = vunpack.c.l.b16 %v141
    %v181 = vunpack.c.l.b16 %v142
    %v182 = vunpack.c.l.b16 %v143
    %v183 = vunpack.c.l.b16 %v144
    %v184 = vunpack.c.l.b16 %v145
    %v185 = vunpack.c.l.b16 %v146
    %v186 = vunpack.c.l.b16 %v147
    %v187 = vunpack.c.l.b16 %v148
    %v188 = vpack.c.b16 %v173, %v172
    %v189 = vpack.c.b16 %v175, %v174
    %v190 = vpack.c.b16 %v177, %v176
    %v191 = vpack.c.b16 %v179, %v178
    %v192 = vpack.c.b16 %v181, %v180
    %v193 = vpack.c.b16 %v183, %v182
    %v194 = vpack.c.b16 %v185, %v184
    %v195 = vpack.c.b16 %v187, %v186
    %204 = vmatprep.subr.bf16.mxu0 0
    %205 = vmatpush1.bf16.msra.mxu0 %v188
    %206 = vmatprep.subr.bf16.mxu0 0
    %207 = vmatpush1.bf16.msra.mxu0 %v189
    %208 = vmatprep.subr.bf16.mxu0 0
    %209 = vmatpush1.bf16.msra.mxu0 %v190
    %210 = vmatprep.subr.bf16.mxu0 0
    %211 = vmatpush1.bf16.msra.mxu0 %v191
    %212 = vmatprep.subr.bf16.mxu0 0
    %213 = vmatpush1.bf16.msra.mxu0 %v192
    %214 = vmatprep.subr.bf16.mxu0 0
    %215 = vmatpush1.bf16.msra.mxu0 %v193
    %216 = vmatprep.subr.bf16.mxu0 0
    %217 = vmatpush1.bf16.msra.mxu0 %v194
    %218 = vmatprep.subr.bf16.mxu0 0
    %219 = vmatpush1.bf16.msra.mxu0 %v195
    %220 = vmatprep.subr.bf16.mxu0 0
    %221 = vmatpush1.bf16.msra.mxu0 0
    %222 = vmatprep.subr.bf16.mxu0 0
    %223 = vmatpush1.bf16.msra.mxu0 0
    %224 = vmatprep.subr.bf16.mxu0 0
    %225 = vmatpush1.bf16.msra.mxu0 0
    %226 = vmatprep.subr.bf16.mxu0 0
    %227 = vmatpush1.bf16.msra.mxu0 0
    %228 = vmatprep.subr.bf16.mxu0 0
    %229 = vmatpush1.bf16.msra.mxu0 0
    %230 = vmatprep.subr.bf16.mxu0 0
    %231 = vmatpush1.bf16.msra.mxu0 0
    %232 = vmatprep.subr.bf16.mxu0 0
    %233 = vmatpush1.bf16.msra.mxu0 0
    %234 = vmatprep.subr.bf16.mxu0 0
    %235 = vmatpush1.bf16.msra.mxu0 0
    %236 = vmatprep.mubr.bf16.mxu0 0
    %237 = vmatmul.mubr.bf16.gmra.mrb[0].mxu0 %v132
    %v238 = vpop.f32.mrb[0].mxu0
    %v239 = vadd.f32 %v154, %v238
    %v240 = vpop.f32.mrb[0].mxu0
    %v241 = vpop.f32.mrb[0].mxu0
    %v242 = vadd.f32 %v154, %v241
    %v243 = vpop.f32.mrb[0].mxu0
    %244 = vdwg.mxu0
    %v245 = vmax.f32 %v239, 0.0
    %v246 = vmax.f32 %v242, 0.0
    %v247 = vpack.c.bf16 %v246, %v245
    %v248 = vld [vmem:[#allocation4] sm:$0xf]
    %v249 = vld [vmem:[#allocation4 + $0x4] sm:$0xf]
    %v250 = vld [vmem:[#allocation4 + $0x8] sm:$0xf]
    %v251 = vld [vmem:[#allocation4 + $0xc] sm:$0xf]
    %v252 = vld [vmem:[#allocation4 + $0x10] sm:$0xf]
    %v253 = vld [vmem:[#allocation4 + $0x14] sm:$0xf]
    %v254 = vld [vmem:[#allocation4 + $0x18] sm:$0xf]
    %v255 = vld [vmem:[#allocation4 + $0x1c] sm:$0xf]
    %v256 = vld [vmem:[#allocation4 + $0x20] sm:$0xf]
    %v257 = vld [vmem:[#allocation4 + $0x24] sm:$0xf]
    %v258 = vld [vmem:[#allocation4 + $0x28] sm:$0xf]
    %v259 = vld [vmem:[#allocation4 + $0x2c] sm:$0xf]
    %v260 = vld [vmem:[#allocation4 + $0x30] sm:$0xf]
    %v261 = vld [vmem:[#allocation4 + $0x34] sm:$0xf]
    %v262 = vld [vmem:[#allocation4 + $0x38] sm:$0xf]
    %v263 = vld [vmem:[#allocation4 + $0x3c] sm:$0xf]
    %v264 = vld [vmem:[%s6] sm:$0x1]
    %v266 = vlaneseq
    %v267 = vshrl.u32 %v266, 7
    %v268 = vsub.s32 0, %v267
    %v269 = vrot.slane %v264, %v268
    %v287 = vunpack.c.l.b16 %v248
    %v288 = vunpack.c.l.b16 %v249
    %v289 = vunpack.c.l.b16 %v250
    %v290 = vunpack.c.l.b16 %v251
    %v291 = vunpack.c.l.b16 %v252
    %v292 = vunpack.c.l.b16 %v253
    %v293 = vunpack.c.l.b16 %v254
    %v294 = vunpack.c.l.b16 %v255
    %v295 = vunpack.c.l.b16 %v256
    %v296 = vunpack.c.l.b16 %v257
    %v297 = vunpack.c.l.b16 %v258
    %v298 = vunpack.c.l.b16 %v259
    %v299 = vunpack.c.l.b16 %v260
    %v300 = vunpack.c.l.b16 %v261
    %v301 = vunpack.c.l.b16 %v262
    %v302 = vunpack.c.l.b16 %v263
    %v303 = vpack.c.b16 %v288, %v287
    %v304 = vpack.c.b16 %v290, %v289
    %v305 = vpack.c.b16 %v292, %v291
    %v306 = vpack.c.b16 %v294, %v293
    %v307 = vpack.c.b16 %v296, %v295
    %v308 = vpack.c.b16 %v298, %v297
    %v309 = vpack.c.b16 %v300, %v299
    %v310 = vpack.c.b16 %v302, %v301
    %319 = vmatprep.subr.bf16.mxu0 0
    %320 = vmatpush1.bf16.msra.mxu0 %v303
    %321 = vmatprep.subr.bf16.mxu0 0
    %322 = vmatpush1.bf16.msra.mxu0 %v304
    %323 = vmatprep.subr.bf16.mxu0 0
    %324 = vmatpush1.bf16.msra.mxu0 %v305
    %325 = vmatprep.subr.bf16.mxu0 0
    %326 = vmatpush1.bf16.msra.mxu0 %v306
    %327 = vmatprep.subr.bf16.mxu0 0
    %328 = vmatpush1.bf16.msra.mxu0 %v307
    %329 = vmatprep.subr.bf16.mxu0 0
    %330 = vmatpush1.bf16.msra.mxu0 %v308
    %331 = vmatprep.subr.bf16.mxu0 0
    %332 = vmatpush1.bf16.msra.mxu0 %v309
    %333 = vmatprep.subr.bf16.mxu0 0
    %334 = vmatpush1.bf16.msra.mxu0 %v310
    %335 = vmatprep.subr.bf16.mxu0 0
    %336 = vmatpush1.bf16.msra.mxu0 0
    %337 = vmatprep.subr.bf16.mxu0 0
    %338 = vmatpush1.bf16.msra.mxu0 0
    %339 = vmatprep.subr.bf16.mxu0 0
    %340 = vmatpush1.bf16.msra.mxu0 0
    %341 = vmatprep.subr.bf16.mxu0 0
    %342 = vmatpush1.bf16.msra.mxu0 0
    %343 = vmatprep.subr.bf16.mxu0 0
    %344 = vmatpush1.bf16.msra.mxu0 0
    %345 = vmatprep.subr.bf16.mxu0 0
    %346 = vmatpush1.bf16.msra.mxu0 0
    %347 = vmatprep.subr.bf16.mxu0 0
    %348 = vmatpush1.bf16.msra.mxu0 0
    %349 = vmatprep.subr.bf16.mxu0 0
    %350 = vmatpush1.bf16.msra.mxu0 0
    %351 = vmatprep.mubr.bf16.mxu0 0
    %352 = vmatmul.mubr.bf16.gmra.mrb[0].mxu0 %v247
    %v353 = vpop.f32.mrb[0].mxu0
    %v354 = vadd.f32 %v269, %v353
    %v355 = vpop.f32.mrb[0].mxu0
    %v356 = vpop.f32.mrb[0].mxu0
    %v357 = vadd.f32 %v269, %v356
    %v358 = vpop.f32.mrb[0].mxu0
    %359 = vdwg.mxu0
    %360 = vmax.xlane.f32.xlu0 %v354
    %v361 = vpop.xlane.xlu0 %360
    %362 = vmax.xlane.f32.xlu0 %v357
    %v363 = vpop.xlane.xlu0 %362
    %v364 = vsub.f32 %v354, %v361
    %v365 = vsub.f32 %v357, %v363
    %v366 = vmul.f32 %v364, 1.442695
    %v367 = vpow.pop %v366
    %v368 = vmul.f32 %v365, 1.442695
    %v369 = vpow.pop %v368
    %370 = vadd.xlane.f32.xlu0 %v367
    %v371 = vpop.xlane.xlu0 %370
    %372 = vadd.xlane.f32.xlu0 %v369
    %v373 = vpop.xlane.xlu0 %372
    %v374 = vlog2.pop %v371
    %v375 = vmul.f32 %v374, 0.6931472
    %v376 = vlog2.pop %v373
    %v377 = vmul.f32 %v376, 0.6931472
    %v378 = vsub.f32 %v364, %v375
    %v379 = vsub.f32 %v365, %v377
    %380 = vst [vmem:[%s7] sm:$0xff] %v378
    %381 = vst [vmem:[%s7 + $0x8] sm:$0xff] %v379
    // Predicated region
    $region38: #{classifier_forward.1} parent=1 // pred_check
      _
    $region39: #{classifier_forward.1} parent=1 // pred_check_branch
      %383 = sbr.rel (0) target = $region41
    $region40: #{classifier_forward.1} parent=1 // pred_region
      _
    $region41: #{classifier_forward.1} parent=1 // pred_fallthru
      _
    // Predicated region
    $region42: #{classifier_forward.1} parent=1 // pred_check
      _
    $region43: #{classifier_forward.1} parent=1 // pred_check_branch
      %385 = sbr.rel (0) target = $region45
    $region44: #{classifier_forward.1} parent=1 // pred_region
      _
    $region45: #{classifier_forward.1} parent=1 // pred_fallthru
      _
    %386 = vsyncpa [#allocation3], 1
    %387 = vsyncpa [#allocation5], 1

</llo_original>
